<compile_context>
chip_gen: v5e
topology: v5e:2x2
jax: 0.10.0
libtpu: 0.0.40
codegen_flags: <defaults>
</compile_context>

<pallas_src>
import numpy as np
import jax
import jax.numpy as jnp
from jax.experimental import pallas as pl
from jax.experimental.pallas import tpu as pltpu

# ------------------------------ config (mimics `args`) ------------------------------
PD_HIDDEN_DIM = 32          # args.pd_hidden_dim
INPUT_SHAPE = 16            # input_shape
OUT_REG = 5                 # output_shape_regression
OUT_CLA = 4                 # output_shape_classification
RES_CLASSIFICATION = True   # args.res_classification
CLASS_NUM = 3 if RES_CLASSIFICATION else 2
N_AGENTS = 3                # args.n_agents

HEADS = OUT_REG + OUT_CLA * CLASS_NUM          # 17
TOT_OUT = HEADS + PD_HIDDEN_DIM                # 49  (useful columns of the slab)
TOT_OUT_PAD = 128                              # lane-dense padded slab width

TILE_CAP = 2048                                # rows per grid step (cap)


def _pick_tile(B):
    """Row tile (multiple of 16 for bf16 sublane packing, capped at TILE_CAP).

    * Small B  -> a single grid step: per-step fixed cost (~0.35 us) dominates
      this tiny model, and v5e/v6e have one TensorCore so extra steps buy
      nothing; v7x parallelism is moot at these sizes.
    * Large B  -> biggest tiles under the cap with an EVEN number of grid
      steps so v7x's 2 TensorCores split the "parallel" axis evenly.
    Per-step VMEM at 2048 rows (bf16 in/out double-buffered + f32 temps) is
    only a few MiB — far inside the 32 MiB scoped default on every generation.
    """
    if B <= TILE_CAP:
        return max(16, ((B + 15) // 16) * 16)
    nb = -(-B // TILE_CAP)
    nb += nb % 2                                  # even step count (v7x)
    tile = ((-(-B // nb) + 15) // 16) * 16
    return max(16, min(tile, TILE_CAP))


# ------------------------------ kernel ------------------------------
def predictor_kernel(inp_ref, h_in_ref,
                     w_sh_ref, b_sh_ref,
                     w_g_ref, b_g_ref,
                     w_heads_ref, b_heads_ref,
                     out_ref):
    H = PD_HIDDEN_DIM

    # shared FC + ReLU (bf16 operands into MXU, f32 accumulate)
    x = jnp.dot(inp_ref[...], w_sh_ref[...],
                preferred_element_type=jnp.float32) + b_sh_ref[...]
    x = jnp.maximum(x, 0.0)
    xb = x.astype(jnp.bfloat16)

    h_prev_b = h_in_ref[...]                       # bf16
    h_prev = h_prev_b.astype(jnp.float32)          # f32 for the gate blend

    # ONE fused lane-dense gate matmul:
    #   [xb | h_prev] (tile, 2H) @ W_gates (2H, 4H) ->
    #   [pre_r | pre_z | gi_n | gh_n] at lanes 0/32/64/96 (r/z biases pre-summed)
    xh = jnp.concatenate([xb, h_prev_b], axis=1)   # (tile, 2H) bf16
    g = jnp.dot(xh, w_g_ref[...],
                preferred_element_type=jnp.float32) + b_g_ref[...]

    # GRU cell (PyTorch semantics, gate order r, z, n); post-matmul math in f32.
    r = jax.nn.sigmoid(g[:, 0:H])
    z = jax.nn.sigmoid(g[:, H:2 * H])
    n = jnp.tanh(g[:, 2 * H:3 * H] + r * g[:, 3 * H:4 * H])
    h = (1.0 - z) * n + z * h_prev

    # fused lane-dense (128-wide) head slab [reg | cla | h | 0pad], bf16 operands
    # into the MXU (I_H is exact in bf16), f32 accumulate, bf16 store.
    out = jnp.dot(h.astype(jnp.bfloat16), w_heads_ref[...],
                  preferred_element_type=jnp.float32) + b_heads_ref[...]
    out_ref[...] = out.astype(jnp.bfloat16)


# ------------------------------ param packing ------------------------------
def pack_params(params):
    """Repack PyTorch-style params for the kernel:
       - ONE fused gate weight (2H, 4H) bf16:
           rows 0..H-1  (x part): [Wi_r | Wi_z | Wi_n | 0 ]
           rows H..2H-1 (h part): [Wh_r | Wh_z | 0    | Wh_n]
         plus a (1, 4H) f32 bias [b_ir+b_hr | b_iz+b_hz | b_in | b_hn]
       - fused, lane-dense head weight [w_reg | w_cla | I_H | 0pad] (H, 128) bf16
         and bias (1, 128) f32."""
    (w_sh, b_sh, w_ih, b_ih, w_hh, b_hh, w_reg, b_reg, w_cla, b_cla) = params
    H = PD_HIDDEN_DIM
    zH = jnp.zeros((H, H), jnp.float32)
    top = jnp.concatenate([w_ih[:, 0:H], w_ih[:, H:2 * H], w_ih[:, 2 * H:3 * H], zH],
                          axis=1)
    bot = jnp.concatenate([w_hh[:, 0:H], w_hh[:, H:2 * H], zH, w_hh[:, 2 * H:3 * H]],
                          axis=1)
    w_gates = jnp.concatenate([top, bot], axis=0).astype(jnp.bfloat16)        # (2H, 4H)
    b_gates = jnp.concatenate([b_ih[:, 0:H] + b_hh[:, 0:H],                   # b_r
                               b_ih[:, H:2 * H] + b_hh[:, H:2 * H],           # b_z
                               b_ih[:, 2 * H:3 * H],                          # b_in
                               b_hh[:, 2 * H:3 * H]], axis=1)                 # (1, 4H) f32

    pad = TOT_OUT_PAD - TOT_OUT
    w_heads = jnp.concatenate([w_reg, w_cla, jnp.eye(H, dtype=jnp.float32),
                               jnp.zeros((H, pad), jnp.float32)],
                              axis=1).astype(jnp.bfloat16)                    # (H, 128)
    b_heads = jnp.concatenate([b_reg, b_cla,
                               jnp.zeros((1, H + pad), jnp.float32)], axis=1)  # (1, 128)
    return (w_sh.astype(jnp.bfloat16), b_sh, w_gates, b_gates, w_heads, b_heads)


# ------------------------------ wrapper ------------------------------
def predictor_gru_forward(inputs, hidden_state, packed):
    """inputs: (b, t, n, d) float32 ; hidden_state: (..., H) reshaped to (-1, H)."""
    b, t, n, d = inputs.shape
    H = PD_HIDDEN_DIM
    B = b * t * n

    # bf16 row streams (dominant HBM read traffic); no jnp.pad — the ragged
    # last block is handled by Pallas (OOB rows are garbage but row-
    # independent, their output writes are dropped).
    inp2d = inputs.reshape(B, d).astype(jnp.bfloat16)
    h2d = hidden_state.reshape(B, H).astype(jnp.bfloat16)

    tile = _pick_tile(B)
    nb = pl.cdiv(B, tile)

    (w_sh, b_sh, w_gates, b_gates, w_heads, b_heads) = packed

    def row_spec(cols):
        return pl.BlockSpec((tile, cols), lambda i: (i, 0))

    def full_spec(a):
        return pl.BlockSpec(a.shape, lambda i: (0,) * a.ndim)

    out2d = pl.pallas_call(
        predictor_kernel,
        out_shape=jax.ShapeDtypeStruct((B, TOT_OUT_PAD), jnp.bfloat16),
        grid_spec=pltpu.PrefetchScalarGridSpec(
            num_scalar_prefetch=0,
            grid=(nb,),
            in_specs=[
                row_spec(d),                # inputs (bf16)
                row_spec(H),                # hidden in (bf16)
                full_spec(w_sh), full_spec(b_sh),
                full_spec(w_gates), full_spec(b_gates),
                full_spec(w_heads), full_spec(b_heads),
            ],
            out_specs=pl.BlockSpec((tile, TOT_OUT_PAD), lambda i: (i, 0)),
        ),
        compiler_params=pltpu.CompilerParams(
            dimension_semantics=("parallel",)),
    )(inp2d, h2d, w_sh, b_sh, w_gates, b_gates, w_heads, b_heads)

    # ---- glue: split the fused slab, reshape, argmax over tiny class dim ----
    reg = out2d[:, :OUT_REG].astype(jnp.float32).reshape(b, t, n, OUT_REG)
    cla_logits = out2d[:, OUT_REG:HEADS].astype(jnp.float32).reshape(
        b, t, n, OUT_CLA, CLASS_NUM)
    # argmax(softmax(x)) == argmax(x) (softmax is monotone along last dim)
    cla_indices = jnp.argmax(cla_logits, axis=-1).astype(jnp.int32)
    if RES_CLASSIFICATION:
        cla_indices = cla_indices - 1
    h = out2d[:, HEADS:TOT_OUT].astype(jnp.float32)
    return reg, cla_logits, cla_indices, h


# ------------------------------ pure-JAX reference ------------------------------
def reference_forward(inputs, hidden_state, params):
    """Same forward math as Predictor_gru, with the same precision choices as
    the kernel (bf16 row streams / matmul operands, f32 accumulate, bf16
    output rounding)."""
    (w_sh, b_sh, w_ih, b_ih, w_hh, b_hh,
     w_reg, b_reg, w_cla, b_cla) = params
    b, t, n, d = inputs.shape
    H = PD_HIDDEN_DIM
    xin = inputs.reshape(-1, d).astype(jnp.bfloat16)
    x = jnp.maximum(jnp.dot(xin, w_sh.astype(jnp.bfloat16),
                            preferred_element_type=jnp.float32) + b_sh, 0.0)
    xb = x.astype(jnp.bfloat16)
    hb = hidden_state.reshape(-1, H).astype(jnp.bfloat16)
    h_prev = hb.astype(jnp.float32)
    gi = jnp.dot(xb, w_ih.astype(jnp.bfloat16),
                 preferred_element_type=jnp.float32) + b_ih
    gh = jnp.dot(hb, w_hh.astype(jnp.bfloat16),
                 preferred_element_type=jnp.float32) + b_hh
    r = jax.nn.sigmoid(gi[:, :H] + gh[:, :H])
    z = jax.nn.sigmoid(gi[:, H:2 * H] + gh[:, H:2 * H])
    nn_ = jnp.tanh(gi[:, 2 * H:] + r * gh[:, 2 * H:])
    h = (1.0 - z) * nn_ + z * h_prev
    hb2 = h.astype(jnp.bfloat16)
    reg = jnp.dot(hb2, w_reg.astype(jnp.bfloat16),
                  preferred_element_type=jnp.float32) + b_reg
    cla = jnp.dot(hb2, w_cla.astype(jnp.bfloat16),
                  preferred_element_type=jnp.float32) + b_cla
    # match the kernel's bf16 output-slab rounding
    reg = reg.astype(jnp.bfloat16).astype(jnp.float32).reshape(b, t, n, OUT_REG)
    cla = cla.astype(jnp.bfloat16).astype(jnp.float32).reshape(
        b, t, n, OUT_CLA, CLASS_NUM)
    h_out = hb2.astype(jnp.float32)
    idx = jnp.argmax(cla, axis=-1).astype(jnp.int32)
    if RES_CLASSIFICATION:
        idx = idx - 1
    return reg, cla, idx, h_out


# ------------------------------ deterministic param init ------------------------------
def init_params(key):
    H = PD_HIDDEN_DIM
    ks = jax.random.split(key, 10)

    def lin(kw, kb, fan_in, fan_out):
        bound = 1.0 / np.sqrt(fan_in)
        w = jax.random.uniform(kw, (fan_in, fan_out), jnp.float32, -bound, bound)
        b = jax.random.uniform(kb, (1, fan_out), jnp.float32, -bound, bound)
        return w, b

    w_sh, b_sh = lin(ks[0], ks[1], INPUT_SHAPE, H)             # fc_shared
    w_ih, b_ih = lin(ks[2], ks[3], H, 3 * H)                   # GRU input weights (r,z,n)
    w_hh, b_hh = lin(ks[4], ks[5], H, 3 * H)                   # GRU hidden weights (r,z,n)
    w_reg, b_reg = lin(ks[6], ks[7], H, OUT_REG)               # fc_regression
    w_cla, b_cla = lin(ks[8], ks[9], H, OUT_CLA * CLASS_NUM)   # fc_classification
    return (w_sh, b_sh, w_ih, b_ih, w_hh, b_hh, w_reg, b_reg, w_cla, b_cla)


# ------------------------------ main ------------------------------
if __name__ == "__main__":
    key = jax.random.PRNGKey(0)
    k_inp, k_hid, k_par = jax.random.split(key, 3)

    b, t, n, d = 2, 4, N_AGENTS, INPUT_SHAPE
    inputs = jax.random.normal(k_inp, (b, t, n, d), jnp.float32)
    hidden = jax.random.normal(k_hid, (b, t, n, PD_HIDDEN_DIM), jnp.float32) * 0.1
    params = init_params(k_par)
    packed = pack_params(params)

    reg, cla_logits, cla_indices, h = predictor_gru_forward(inputs, hidden, packed)
    jax.block_until_ready((reg, cla_logits, cla_indices, h))

    # sanity check against pure-JAX reference
    reg_r, cla_r, idx_r, h_r = reference_forward(inputs, hidden, params)
    assert reg.shape == (b, t, n, OUT_REG)
    assert cla_logits.shape == (b, t, n, OUT_CLA, CLASS_NUM)
    assert cla_indices.shape == (b, t, n, OUT_CLA)
    assert h.shape == (b * t * n, PD_HIDDEN_DIM)
    np.testing.assert_allclose(np.asarray(reg), np.asarray(reg_r), rtol=2e-2, atol=2e-2)
    np.testing.assert_allclose(np.asarray(cla_logits), np.asarray(cla_r), rtol=2e-2, atol=2e-2)
    np.testing.assert_allclose(np.asarray(h), np.asarray(h_r), rtol=2e-2, atol=2e-2)
    # argmax indices: compare only where the reference top-2 margin is not a
    # numerical tie (guards against fp-rounding flips on near-equal logits).
    cla_r_np = np.asarray(cla_r, dtype=np.float32)
    srt = np.sort(cla_r_np, axis=-1)
    stable = (srt[..., -1] - srt[..., -2]) > 1e-3
    np.testing.assert_array_equal(np.asarray(cla_indices)[stable],
                                  np.asarray(idx_r)[stable])

    print("KERNEL_OK")
</pallas_src>

<mosaic_0001>
module attributes {stable_mosaic.version = 11 : i64} {
  func.func @predictor_kernel(%arg0: i32, %arg1: memref<32x16xbf16, #tpu.memory_space<vmem>>, %arg2: memref<32x32xbf16, #tpu.memory_space<vmem>>, %arg3: memref<16x32xbf16, #tpu.memory_space<vmem>>, %arg4: memref<1x32xf32, #tpu.memory_space<vmem>>, %arg5: memref<64x128xbf16, #tpu.memory_space<vmem>>, %arg6: memref<1x128xf32, #tpu.memory_space<vmem>>, %arg7: memref<32x128xbf16, #tpu.memory_space<vmem>>, %arg8: memref<1x128xf32, #tpu.memory_space<vmem>>, %arg9: memref<32x128xbf16, #tpu.memory_space<vmem>>) attributes {dimension_semantics = [#tpu.dimension_semantics<parallel>], iteration_bounds = array<i64: 1>, scalar_prefetch = 0 : i64, scratch_operands = 0 : i64, tpu.core_type = #tpu.core_type<tc>, window_params = [{transform_indices = @transform_0, window_bounds = array<i64: 32, 16>}, {transform_indices = @transform_1, window_bounds = array<i64: 32, 32>}, {pipeline_mode = #tpu.pipeline_mode<synchronous>, transform_indices = @transform_2, window_bounds = array<i64: 16, 32>}, {pipeline_mode = #tpu.pipeline_mode<synchronous>, transform_indices = @transform_3, window_bounds = array<i64: 1, 32>}, {pipeline_mode = #tpu.pipeline_mode<synchronous>, transform_indices = @transform_4, window_bounds = array<i64: 64, 128>}, {pipeline_mode = #tpu.pipeline_mode<synchronous>, transform_indices = @transform_5, window_bounds = array<i64: 1, 128>}, {pipeline_mode = #tpu.pipeline_mode<synchronous>, transform_indices = @transform_6, window_bounds = array<i64: 32, 128>}, {pipeline_mode = #tpu.pipeline_mode<synchronous>, transform_indices = @transform_7, window_bounds = array<i64: 1, 128>}, {transform_indices = @transform_8, window_bounds = array<i64: 32, 128>}]} {
    %c0 = arith.constant 0 : index
    %c0_0 = arith.constant 0 : index
    %0 = vector.load %arg1[%c0, %c0_0] : memref<32x16xbf16, #tpu.memory_space<vmem>>, vector<32x16xbf16>
    %c0_1 = arith.constant 0 : index
    %c0_2 = arith.constant 0 : index
    %1 = vector.load %arg3[%c0_1, %c0_2] : memref<16x32xbf16, #tpu.memory_space<vmem>>, vector<16x32xbf16>
    %cst = arith.constant dense<0.000000e+00> : vector<32x32xf32>
    %2 = tpu.matmul %0, %1, %cst {dimension_numbers = #tpu.dot_dimension_numbers<[1], [0], [0], [1], [0, 0, 1, 1], [], []>} : vector<32x16xbf16>, vector<16x32xbf16>, vector<32x32xf32> -> vector<32x32xf32>
    %c0_3 = arith.constant 0 : index
    %c0_4 = arith.constant 0 : index
    %3 = vector.load %arg4[%c0_3, %c0_4] : memref<1x32xf32, #tpu.memory_space<vmem>>, vector<1x32xf32>
    %4 = vector.broadcast %3 : vector<1x32xf32> to vector<32x32xf32>
    %5 = arith.addf %2, %4 : vector<32x32xf32>
    %cst_5 = arith.constant 0.000000e+00 : f32
    %6 = vector.broadcast %cst_5 : f32 to vector<32x32xf32>
    %7 = arith.maximumf %5, %6 : vector<32x32xf32>
    %8 = arith.truncf %7 : vector<32x32xf32> to vector<32x32xbf16>
    %c0_6 = arith.constant 0 : index
    %c0_7 = arith.constant 0 : index
    %9 = vector.load %arg2[%c0_6, %c0_7] : memref<32x32xbf16, #tpu.memory_space<vmem>>, vector<32x32xbf16>
    %10 = arith.extf %9 : vector<32x32xbf16> to vector<32x32xf32>
    %11 = tpu.concatenate %8, %9 in 1 : vector<32x32xbf16>, vector<32x32xbf16> -> vector<32x64xbf16>
    %c0_8 = arith.constant 0 : index
    %c0_9 = arith.constant 0 : index
    %12 = vector.load %arg5[%c0_8, %c0_9] : memref<64x128xbf16, #tpu.memory_space<vmem>>, vector<64x128xbf16>
    %cst_10 = arith.constant dense<0.000000e+00> : vector<32x128xf32>
    %13 = tpu.matmul %11, %12, %cst_10 {dimension_numbers = #tpu.dot_dimension_numbers<[1], [0], [0], [1], [0, 0, 1, 1], [], []>} : vector<32x64xbf16>, vector<64x128xbf16>, vector<32x128xf32> -> vector<32x128xf32>
    %c0_11 = arith.constant 0 : index
    %c0_12 = arith.constant 0 : index
    %14 = vector.load %arg6[%c0_11, %c0_12] : memref<1x128xf32, #tpu.memory_space<vmem>>, vector<1x128xf32>
    %15 = vector.broadcast %14 : vector<1x128xf32> to vector<32x128xf32>
    %16 = arith.addf %13, %15 : vector<32x128xf32>
    %17 = vector.extract_strided_slice %16 {offsets = [0, 0], sizes = [32, 32], strides = [1, 1]} : vector<32x128xf32> to vector<32x32xf32>
    %18 = arith.negf %17 : vector<32x32xf32>
    %19 = math.exp %18 : vector<32x32xf32>
    %cst_13 = arith.constant 1.000000e+00 : f32
    %20 = vector.broadcast %cst_13 : f32 to vector<32x32xf32>
    %21 = arith.addf %20, %19 : vector<32x32xf32>
    %22 = arith.divf %20, %21 : vector<32x32xf32>
    %23 = vector.extract_strided_slice %16 {offsets = [0, 32], sizes = [32, 32], strides = [1, 1]} : vector<32x128xf32> to vector<32x32xf32>
    %24 = arith.negf %23 : vector<32x32xf32>
    %25 = math.exp %24 : vector<32x32xf32>
    %cst_14 = arith.constant 1.000000e+00 : f32
    %26 = vector.broadcast %cst_14 : f32 to vector<32x32xf32>
    %27 = arith.addf %26, %25 : vector<32x32xf32>
    %28 = arith.divf %26, %27 : vector<32x32xf32>
    %29 = vector.extract_strided_slice %16 {offsets = [0, 64], sizes = [32, 32], strides = [1, 1]} : vector<32x128xf32> to vector<32x32xf32>
    %30 = vector.extract_strided_slice %16 {offsets = [0, 96], sizes = [32, 32], strides = [1, 1]} : vector<32x128xf32> to vector<32x32xf32>
    %31 = arith.mulf %22, %30 : vector<32x32xf32>
    %32 = arith.addf %29, %31 : vector<32x32xf32>
    %33 = math.tanh %32 : vector<32x32xf32>
    %cst_15 = arith.constant 1.000000e+00 : f32
    %34 = vector.broadcast %cst_15 : f32 to vector<32x32xf32>
    %35 = arith.subf %34, %28 : vector<32x32xf32>
    %36 = arith.mulf %35, %33 : vector<32x32xf32>
    %37 = arith.mulf %28, %10 : vector<32x32xf32>
    %38 = arith.addf %36, %37 : vector<32x32xf32>
    %39 = arith.truncf %38 : vector<32x32xf32> to vector<32x32xbf16>
    %c0_16 = arith.constant 0 : index
    %c0_17 = arith.constant 0 : index
    %40 = vector.load %arg7[%c0_16, %c0_17] : memref<32x128xbf16, #tpu.memory_space<vmem>>, vector<32x128xbf16>
    %cst_18 = arith.constant dense<0.000000e+00> : vector<32x128xf32>
    %41 = tpu.matmul %39, %40, %cst_18 {dimension_numbers = #tpu.dot_dimension_numbers<[1], [0], [0], [1], [0, 0, 1, 1], [], []>} : vector<32x32xbf16>, vector<32x128xbf16>, vector<32x128xf32> -> vector<32x128xf32>
    %c0_19 = arith.constant 0 : index
    %c0_20 = arith.constant 0 : index
    %42 = vector.load %arg8[%c0_19, %c0_20] : memref<1x128xf32, #tpu.memory_space<vmem>>, vector<1x128xf32>
    %43 = vector.broadcast %42 : vector<1x128xf32> to vector<32x128xf32>
    %44 = arith.addf %41, %43 : vector<32x128xf32>
    %45 = arith.truncf %44 : vector<32x128xf32> to vector<32x128xbf16>
    %c0_21 = arith.constant 0 : index
    %c0_22 = arith.constant 0 : index
    %46 = vector.load %arg9[%c0_21, %c0_22] : memref<32x128xbf16, #tpu.memory_space<vmem>>, vector<32x128xbf16>
    tpu.vector_store %arg9[%c0_21, %c0_22], %45 {strides = array<i32>} : memref<32x128xbf16, #tpu.memory_space<vmem>>, vector<32x128xbf16>,
    return
  }
  func.func @transform_0(%arg0: i32) -> (i32, i32) {
    %c0_i32 = arith.constant 0 : i32
    %c0_i32_0 = arith.constant 0 : i32
    return %arg0, %c0_i32 : i32, i32
  }
  func.func @transform_1(%arg0: i32) -> (i32, i32) {
    %c0_i32 = arith.constant 0 : i32
    %c0_i32_0 = arith.constant 0 : i32
    return %arg0, %c0_i32 : i32, i32
  }
  func.func @transform_2(%arg0: i32) -> (i32, i32) {
    %c0_i32 = arith.constant 0 : i32
    %c0_i32_0 = arith.constant 0 : i32
    %c0_i32_1 = arith.constant 0 : i32
    return %c0_i32, %c0_i32_0 : i32, i32
  }
  func.func @transform_3(%arg0: i32) -> (i32, i32) {
    %c0_i32 = arith.constant 0 : i32
    %c0_i32_0 = arith.constant 0 : i32
    %c0_i32_1 = arith.constant 0 : i32
    return %c0_i32, %c0_i32_0 : i32, i32
  }
  func.func @transform_4(%arg0: i32) -> (i32, i32) {
    %c0_i32 = arith.constant 0 : i32
    %c0_i32_0 = arith.constant 0 : i32
    %c0_i32_1 = arith.constant 0 : i32
    return %c0_i32, %c0_i32_0 : i32, i32
  }
  func.func @transform_5(%arg0: i32) -> (i32, i32) {
    %c0_i32 = arith.constant 0 : i32
    %c0_i32_0 = arith.constant 0 : i32
    %c0_i32_1 = arith.constant 0 : i32
    return %c0_i32, %c0_i32_0 : i32, i32
  }
  func.func @transform_6(%arg0: i32) -> (i32, i32) {
    %c0_i32 = arith.constant 0 : i32
    %c0_i32_0 = arith.constant 0 : i32
    %c0_i32_1 = arith.constant 0 : i32
    return %c0_i32, %c0_i32_0 : i32, i32
  }
  func.func @transform_7(%arg0: i32) -> (i32, i32) {
    %c0_i32 = arith.constant 0 : i32
    %c0_i32_0 = arith.constant 0 : i32
    %c0_i32_1 = arith.constant 0 : i32
    return %c0_i32, %c0_i32_0 : i32, i32
  }
  func.func @transform_8(%arg0: i32) -> (i32, i32) {
    %c0_i32 = arith.constant 0 : i32
    %c0_i32_0 = arith.constant 0 : i32
    return %arg0, %c0_i32 : i32, i32
  }
}

</mosaic_0001>

<llo_original>
// kernel: tpu_custom_call.1
$region0: #{tpu_custom_call.1}
  #allocation0 [shape = 'u32[]', space=smem, size = 0x4, offset = 0x4, fixed_abs, tag = 'smem constant byte address 0x4 - core index']
  #allocation1 [shape = 'u32[72,128]{1,0:T(1,128)}', space=vmem, size = 0x9000, scoped, tag = 'internal scratch']
  %s0 = inlined_call_operand.vmem [shape: bf16[24,16], index: 0, kind: input, shape index: {}]
  %s1 = inlined_call_operand.hbm [shape: bf16[24,32], index: 1, kind: input, shape index: {}]
  %s2 = inlined_call_operand.vmem [shape: bf16[16,32], index: 2, kind: input, shape index: {}]
  %s3 = inlined_call_operand.vmem [shape: f32[1,32], index: 3, kind: input, shape index: {}]
  %s4 = inlined_call_operand.hbm [shape: bf16[64,128], index: 4, kind: input, shape index: {}]
  %s5 = inlined_call_operand.hbm [shape: f32[1,128], index: 5, kind: input, shape index: {}]
  %s6 = inlined_call_operand.vmem [shape: bf16[32,128], index: 6, kind: input, shape index: {}]
  %s7 = inlined_call_operand.vmem [shape: f32[1,128], index: 7, kind: input, shape index: {}]
  %s8 = inlined_call_operand.hbm [shape: bf16[24,128], index: 8, kind: output, shape index: {}]
  %s9 = sld [smem:[#allocation0]]
  $region54: #{tpu_custom_call.1} parent=0
    _
  %s11 = ssub.s32 1, %s9
  %s12 = scalar_select 0, %s11, %s9
  $region1: #{tpu_custom_call.1} parent=0
    #allocation2 [shape = 'u8[8192]{0}', space=vmem, size = 0x2000, scoped, tag = 'input window, operand 1, single buffered']
    #allocation3 [shape = 's32[1]{0}', space=sflag, size = 0x4, scoped, tag = 'scoped memory for tpu_custom_call.1']
    #allocation4 [shape = 's32[1]{0}', space=sflag, size = 0x4, scoped, tag = 'scoped memory for tpu_custom_call.1']
    #allocation5 [shape = 'u8[16384]{0}', space=vmem, size = 0x4000, scoped, tag = 'input window, operand 4, single buffered']
    #allocation6 [shape = 's32[1]{0}', space=sflag, size = 0x4, scoped, tag = 'scoped memory for tpu_custom_call.1']
    #allocation7 [shape = 'u8[512]{0}', space=vmem, size = 0x400, scoped, tag = 'input window, operand 5, single buffered']
    #allocation8 [shape = 'u8[8192]{0}', space=vmem, size = 0x2000, scoped, tag = 'output window, operand 0, single buffered']
    %13 = vsyncpa [#allocation3], 0
    %14 = vsyncpa [#allocation6], 0
    %15 = vsyncpa [#allocation4], 0
    // Predicated region
    $region2: #{tpu_custom_call.1} parent=1 // pred_check
      _
    $region3: #{tpu_custom_call.1} parent=1 // pred_check_branch
      %17 = sbr.rel (0) target = $region5
    $region4: #{tpu_custom_call.1} parent=1 // pred_region
      _
    $region5: #{tpu_custom_call.1} parent=1 // pred_fallthru
      _
    // Predicated region
    $region6: #{tpu_custom_call.1} parent=1 // pred_check
      _
    $region7: #{tpu_custom_call.1} parent=1 // pred_check_branch
      %19 = sbr.rel (0) target = $region9
    $region8: #{tpu_custom_call.1} parent=1 // pred_region
      %21 = vsyncadd [#allocation3], 64
      %s22 = sshll.u32 %s1, 4
      %s23 = int_to_ptr.hbm [resolvable:$true] %s22
      %s24 = sshll.u32 [#allocation2], 4
      %s25 = int_to_ptr.vmem [resolvable:$true] %s24
      %30 = dma.hbm_to_vmem [thread:$0]  %s23, 192, %s25, [#allocation3], 64, 64, 4
    $region9: #{tpu_custom_call.1} parent=1 // pred_fallthru
      _
    // Predicated region
    $region10: #{tpu_custom_call.1} parent=1 // pred_check
      _
    $region11: #{tpu_custom_call.1} parent=1 // pred_check_branch
      %32 = sbr.rel (0) target = $region13
    $region12: #{tpu_custom_call.1} parent=1 // pred_region
      _
    $region13: #{tpu_custom_call.1} parent=1 // pred_fallthru
      _
    // Predicated region
    $region14: #{tpu_custom_call.1} parent=1 // pred_check
      _
    $region15: #{tpu_custom_call.1} parent=1 // pred_check_branch
      %34 = sbr.rel (0) target = $region17
    $region16: #{tpu_custom_call.1} parent=1 // pred_region
      _
    $region17: #{tpu_custom_call.1} parent=1 // pred_fallthru
      _
    // Predicated region
    $region18: #{tpu_custom_call.1} parent=1 // pred_check
      _
    $region19: #{tpu_custom_call.1} parent=1 // pred_check_branch
      %36 = sbr.rel (0) target = $region21
    $region20: #{tpu_custom_call.1} parent=1 // pred_region
      %38 = vsyncadd [#allocation6], 0
      %s39 = sshll.u32 %s4, 4
      %s40 = int_to_ptr.hbm [resolvable:$true] %s39
      %s41 = sshll.u32 [#allocation5], 4
      %s42 = int_to_ptr.vmem [resolvable:$true] %s41
      %47 = dma.hbm_to_vmem [thread:$0]  %s40, 512, %s42, [#allocation6], 64, 64, 4
    $region21: #{tpu_custom_call.1} parent=1 // pred_fallthru
      _
    // Predicated region
    $region22: #{tpu_custom_call.1} parent=1 // pred_check
      _
    $region23: #{tpu_custom_call.1} parent=1 // pred_check_branch
      %49 = sbr.rel (0) target = $region25
    $region24: #{tpu_custom_call.1} parent=1 // pred_region
      %51 = vsyncadd [#allocation6], 0
      %s53 = sshll.u32 %s5, 4
      %s54 = int_to_ptr.hbm [resolvable:$true] %s53
      %s55 = sshll.u32 [#allocation7], 4
      %s56 = int_to_ptr.vmem [resolvable:$true] %s55
      %58 = dma.hbm_to_vmem [thread:$0]  %s54, 16, %s56, [#allocation6]
    $region25: #{tpu_custom_call.1} parent=1 // pred_fallthru
      _
    // Predicated region
    $region26: #{tpu_custom_call.1} parent=1 // pred_check
      _
    $region27: #{tpu_custom_call.1} parent=1 // pred_check_branch
      %60 = sbr.rel (0) target = $region29
    $region28: #{tpu_custom_call.1} parent=1 // pred_region
      _
    $region29: #{tpu_custom_call.1} parent=1 // pred_fallthru
      _
    // Predicated region
    $region30: #{tpu_custom_call.1} parent=1 // pred_check
      _
    $region31: #{tpu_custom_call.1} parent=1 // pred_check_branch
      %62 = sbr.rel (0) target = $region33
    $region32: #{tpu_custom_call.1} parent=1 // pred_region
      _
    $region33: #{tpu_custom_call.1} parent=1 // pred_fallthru
      _
    // Predicated region
    $region34: #{tpu_custom_call.1} parent=1 // pred_check
      _
    $region35: #{tpu_custom_call.1} parent=1 // pred_check_branch
      %64 = sbr.rel (0) target = $region37
    $region36: #{tpu_custom_call.1} parent=1 // pred_region
      %66 = dma.done [#allocation3], 256
    $region37: #{tpu_custom_call.1} parent=1 // pred_fallthru
      _
    // Predicated region
    $region38: #{tpu_custom_call.1} parent=1 // pred_check
      _
    $region39: #{tpu_custom_call.1} parent=1 // pred_check_branch
      %68 = sbr.rel (0) target = $region41
    $region40: #{tpu_custom_call.1} parent=1 // pred_region
      %70 = dma.done [#allocation6], 512
    $region41: #{tpu_custom_call.1} parent=1 // pred_fallthru
      _
    // Predicated region
    $region42: #{tpu_custom_call.1} parent=1 // pred_check
      _
    $region43: #{tpu_custom_call.1} parent=1 // pred_check_branch
      %72 = sbr.rel (0) target = $region45
    $region44: #{tpu_custom_call.1} parent=1 // pred_region
      %74 = dma.done [#allocation6], 16
    $region45: #{tpu_custom_call.1} parent=1 // pred_fallthru
      _
    %v76 = vld [vmem:[%s0] sm:$0xf]
    %v77 = vld [vmem:[%s0 + $0x4] sm:$0xf]
    %v78 = vld [vmem:[%s0 + $0x8] sm:$0xf]
    %v79 = vld [vmem:[%s0 + $0xc] sm:$0xf]
    %v80 = vld [vmem:[%s2] sm:$0xf]
    %v81 = vld [vmem:[%s2 + $0x4] sm:$0xf]
    %v82 = vld [vmem:[%s3] sm:$0x1]
    %v84 = vperm.slane %v82, 0
    %v90 = vunpack.c.l.b16 %v76
    %v91 = vunpack.c.l.b16 %v77
    %v92 = vunpack.c.l.b16 %v78
    %v93 = vunpack.c.l.b16 %v79
    %v94 = vpack.c.b16 %v91, %v90
    %v95 = vpack.c.b16 %v93, %v92
    %v98 = vunpack.c.l.b16 %v80
    %v99 = vunpack.c.l.b16 %v81
    %v100 = vpack.c.b16 %v99, %v98
    %vm102 = vcmask 130048
    %v104 = vsel %vm102, %v94, 0
    %v107 = vsel %vm102, %v95, 0
    %109 = vmatpush.bf16.msra.mxu0 0
    %110 = vmatpush.bf16.msra.mxu0 0
    %111 = vmatpush.bf16.msra.mxu0 0
    %112 = vmatpush.bf16.msra.mxu0 0
    %113 = vmatpush.bf16.msra.mxu0 0
    %114 = vmatpush.bf16.msra.mxu0 0
    %115 = vmatpush.bf16.msra.mxu0 0
    %116 = vmatpush.bf16.msra.mxu0 %v100
    %117 = vmatmul.bf16.gmra.mxu0 %v104
    %v118 = vpop.f32.mrf.mxu0
    %v119 = vadd.f32 %v84, %v118
    %v120 = vpop.f32.mrf.mxu0
    %v121 = vadd.f32 %v84, %v120
    %122 = vmatmul.bf16.gmra.mxu0 %v107
    %v123 = vpop.f32.mrf.mxu0
    %v124 = vadd.f32 %v84, %v123
    %v125 = vpop.f32.mrf.mxu0
    %v126 = vadd.f32 %v84, %v125
    %127 = vdwg.mxu0
    %v128 = vmax.f32 %v119, 0.0
    %v129 = vmax.f32 %v121, 0.0
    %v130 = vmax.f32 %v124, 0.0
    %v131 = vmax.f32 %v126, 0.0
    %v132 = vpack.c.bf16 %v128, %v128
    %v133 = vpack.c.bf16 %v129, %v129
    %v134 = vpack.c.bf16 %v130, %v130
    %v135 = vpack.c.bf16 %v131, %v131
    %v136 = vld [vmem:[#allocation2] sm:$0xf]
    %v137 = vld [vmem:[#allocation2 + $0x4] sm:$0xf]
    %v138 = vld [vmem:[#allocation2 + $0x8] sm:$0xf]
    %v139 = vld [vmem:[#allocation2 + $0xc] sm:$0xf]
    %v140 = vunpack.c.l.bf16 %v136
    %v141 = vunpack.c.l.bf16 %v137
    %v142 = vunpack.c.l.bf16 %v138
    %v143 = vunpack.c.l.bf16 %v139
    %v148 = vunpack.c.l.b16 %v132
    %v149 = vunpack.c.l.b16 %v133
    %v150 = vunpack.c.l.b16 %v134
    %v151 = vunpack.c.l.b16 %v135
    %v152 = vpack.c.b16 %v149, %v148
    %v153 = vpack.c.b16 %v151, %v150
    %v158 = vunpack.c.l.b16 %v136
    %v159 = vunpack.c.l.b16 %v137
    %v160 = vunpack.c.l.b16 %v138
    %v161 = vunpack.c.l.b16 %v139
    %v162 = vpack.c.b16 %v159, %v158
    %v163 = vpack.c.b16 %v161, %v160
    %164 = vrot.lane.b32.xlu0 %v162, 32
    %v165 = vpop.permute.xlu0 %164
    %166 = vrot.lane.b32.xlu0 %v163, 32
    %v167 = vpop.permute.xlu0 %166
    %vm168 = vcmask 261120
    %v171 = vsel %vm168, %v152, %v165
    %v174 = vsel %vm168, %v153, %v167
    %v175 = vld [vmem:[#allocation5] sm:$0xf]
    %v176 = vld [vmem:[#allocation5 + $0x4] sm:$0xf]
    %v177 = vld [vmem:[#allocation5 + $0x8] sm:$0xf]
    %v178 = vld [vmem:[#allocation5 + $0xc] sm:$0xf]
    %v179 = vld [vmem:[#allocation5 + $0x10] sm:$0xf]
    %v180 = vld [vmem:[#allocation5 + $0x14] sm:$0xf]
    %v181 = vld [vmem:[#allocation5 + $0x18] sm:$0xf]
    %v182 = vld [vmem:[#allocation5 + $0x1c] sm:$0xf]
    %v183 = vld [vmem:[#allocation7] sm:$0x1]
    %v185 = vperm.slane %v183, 0
    %v195 = vunpack.c.l.b16 %v175
    %v196 = vunpack.c.l.b16 %v176
    %v197 = vunpack.c.l.b16 %v177
    %v198 = vunpack.c.l.b16 %v178
    %v199 = vunpack.c.l.b16 %v179
    %v200 = vunpack.c.l.b16 %v180
    %v201 = vunpack.c.l.b16 %v181
    %v202 = vunpack.c.l.b16 %v182
    %v203 = vpack.c.b16 %v196, %v195
    %v204 = vpack.c.b16 %v198, %v197
    %v205 = vpack.c.b16 %v200, %v199
    %v206 = vpack.c.b16 %v202, %v201
    %vm211 = vcmask 523264
    %v212 = vsel %vm211, %v171, 0
    %v214 = vsel %vm211, %v174, 0
    %216 = vmatpush.bf16.msra.mxu0 0
    %217 = vmatpush.bf16.msra.mxu0 0
    %218 = vmatpush.bf16.msra.mxu0 0
    %219 = vmatpush.bf16.msra.mxu0 0
    %220 = vmatpush.bf16.msra.mxu0 %v206
    %221 = vmatpush.bf16.msra.mxu0 %v205
    %222 = vmatpush.bf16.msra.mxu0 %v204
    %223 = vmatpush.bf16.msra.mxu0 %v203
    %224 = vmatmul.bf16.gmra.mxu0 %v212
    %v225 = vpop.f32.mrf.mxu0
    %v226 = vadd.f32 %v185, %v225
    %v227 = vpop.f32.mrf.mxu0
    %v228 = vadd.f32 %v185, %v227
    %229 = vmatmul.bf16.gmra.mxu0 %v214
    %v230 = vpop.f32.mrf.mxu0
    %v231 = vadd.f32 %v185, %v230
    %v232 = vpop.f32.mrf.mxu0
    %v233 = vadd.f32 %v185, %v232
    %234 = vdwg.mxu0
    %v235 = vxor.u32 %v226, 2147483648
    %v236 = vxor.u32 %v228, 2147483648
    %v237 = vxor.u32 %v231, 2147483648
    %v238 = vxor.u32 %v233, 2147483648
    %v239 = vmul.f32 %v235, 1.442695
    %v240 = vpow.pop %v239
    %v241 = vmul.f32 %v236, 1.442695
    %v242 = vpow.pop %v241
    %v243 = vmul.f32 %v237, 1.442695
    %v244 = vpow.pop %v243
    %v245 = vmul.f32 %v238, 1.442695
    %v246 = vpow.pop %v245
    %v247 = vadd.f32 %v240, 1.0
    %v248 = vadd.f32 %v242, 1.0
    %v249 = vadd.f32 %v244, 1.0
    %v250 = vadd.f32 %v246, 1.0
    %v251 = vrcp.pop %v247
    %v252 = vmul.f32 %v247, %v251
    %v253 = vsub.f32 1.0, %v252
    %v254 = vmul.f32 %v251, %v253
    %v255 = vadd.f32 %v251, %v254
    %vm256 = vweird.f32 %v247
    %vm257 = vweird.f32 %v251
    %vm258 = vmor %vm256, %vm257
    %v259 = vsel %vm258, %v251, %v255
    %v260 = vand.u32 2147483647, %v247
    %vm261 = vcmp.eq.f32.partialorder %v260, 8.507059e+37
    %v262 = vand.u32 %v247, 2147483648
    %v263 = vor.u32 1.1754944e-38, %v262
    %v264 = vsel %vm261, %v263, %v259
    %v265 = vmul.f32 1.0, %v264
    %v266 = vrcp.pop %v248
    %v267 = vmul.f32 %v248, %v266
    %v268 = vsub.f32 1.0, %v267
    %v269 = vmul.f32 %v266, %v268
    %v270 = vadd.f32 %v266, %v269
    %vm271 = vweird.f32 %v248
    %vm272 = vweird.f32 %v266
    %vm273 = vmor %vm271, %vm272
    %v274 = vsel %vm273, %v266, %v270
    %v275 = vand.u32 2147483647, %v248
    %vm276 = vcmp.eq.f32.partialorder %v275, 8.507059e+37
    %v277 = vand.u32 %v248, 2147483648
    %v278 = vor.u32 1.1754944e-38, %v277
    %v279 = vsel %vm276, %v278, %v274
    %v280 = vmul.f32 1.0, %v279
    %v281 = vrcp.pop %v249
    %v282 = vmul.f32 %v249, %v281
    %v283 = vsub.f32 1.0, %v282
    %v284 = vmul.f32 %v281, %v283
    %v285 = vadd.f32 %v281, %v284
    %vm286 = vweird.f32 %v249
    %vm287 = vweird.f32 %v281
    %vm288 = vmor %vm286, %vm287
    %v289 = vsel %vm288, %v281, %v285
    %v290 = vand.u32 2147483647, %v249
    %vm291 = vcmp.eq.f32.partialorder %v290, 8.507059e+37
    %v292 = vand.u32 %v249, 2147483648
    %v293 = vor.u32 1.1754944e-38, %v292
    %v294 = vsel %vm291, %v293, %v289
    %v295 = vmul.f32 1.0, %v294
    %v296 = vrcp.pop %v250
    %v297 = vmul.f32 %v250, %v296
    %v298 = vsub.f32 1.0, %v297
    %v299 = vmul.f32 %v296, %v298
    %v300 = vadd.f32 %v296, %v299
    %vm301 = vweird.f32 %v250
    %vm302 = vweird.f32 %v296
    %vm303 = vmor %vm301, %vm302
    %v304 = vsel %vm303, %v296, %v300
    %v305 = vand.u32 2147483647, %v250
    %vm306 = vcmp.eq.f32.partialorder %v305, 8.507059e+37
    %v307 = vand.u32 %v250, 2147483648
    %v308 = vor.u32 1.1754944e-38, %v307
    %v309 = vsel %vm306, %v308, %v304
    %v310 = vmul.f32 1.0, %v309
    %315 = vrot.lane.b32.xlu0 %v226, 32
    %v316 = vpop.permute.xlu0 %315
    %317 = vrot.lane.b32.xlu0 %v228, 32
    %v318 = vpop.permute.xlu0 %317
    %319 = vrot.lane.b32.xlu0 %v231, 32
    %v320 = vpop.permute.xlu0 %319
    %321 = vrot.lane.b32.xlu0 %v233, 32
    %v322 = vpop.permute.xlu0 %321
    %v327 = vmul.f32 %v265, %v316
    %v328 = vmul.f32 %v280, %v318
    %v329 = vmul.f32 %v295, %v320
    %v330 = vmul.f32 %v310, %v322
    %335 = vrot.lane.b32.xlu0 %v327, 64
    %v336 = vpop.permute.xlu0 %335
    %337 = vrot.lane.b32.xlu0 %v328, 64
    %v338 = vpop.permute.xlu0 %337
    %339 = vrot.lane.b32.xlu0 %v329, 64
    %v340 = vpop.permute.xlu0 %339
    %341 = vrot.lane.b32.xlu0 %v330, 64
    %v342 = vpop.permute.xlu0 %341
    %v347 = vadd.f32 %v226, %v336
    %v348 = vadd.f32 %v228, %v338
    %v349 = vadd.f32 %v231, %v340
    %v350 = vadd.f32 %v233, %v342
    %v351 = vtanh.pop %v347
    %v352 = vtanh.pop %v348
    %v353 = vtanh.pop %v349
    %v354 = vtanh.pop %v350
    %v355 = vsub.f32 1.0, %v265
    %v356 = vsub.f32 1.0, %v280
    %v357 = vsub.f32 1.0, %v295
    %v358 = vsub.f32 1.0, %v310
    %363 = vrot.lane.b32.xlu0 %v351, 96
    %v364 = vpop.permute.xlu0 %363
    %365 = vrot.lane.b32.xlu0 %v352, 96
    %v366 = vpop.permute.xlu0 %365
    %367 = vrot.lane.b32.xlu0 %v353, 96
    %v368 = vpop.permute.xlu0 %367
    %369 = vrot.lane.b32.xlu0 %v354, 96
    %v370 = vpop.permute.xlu0 %369
    %v375 = vmul.f32 %v355, %v364
    %v376 = vmul.f32 %v356, %v366
    %v377 = vmul.f32 %v357, %v368
    %v378 = vmul.f32 %v358, %v370
    %383 = vrot.lane.b32.xlu0 %v140, 32
    %v384 = vpop.permute.xlu0 %383
    %385 = vrot.lane.b32.xlu0 %v141, 32
    %v386 = vpop.permute.xlu0 %385
    %387 = vrot.lane.b32.xlu0 %v142, 32
    %v388 = vpop.permute.xlu0 %387
    %389 = vrot.lane.b32.xlu0 %v143, 32
    %v390 = vpop.permute.xlu0 %389
    %v395 = vmul.f32 %v265, %v384
    %v396 = vmul.f32 %v280, %v386
    %v397 = vmul.f32 %v295, %v388
    %v398 = vmul.f32 %v310, %v390
    %v399 = vadd.f32 %v375, %v395
    %v400 = vadd.f32 %v376, %v396
    %v401 = vadd.f32 %v377, %v397
    %v402 = vadd.f32 %v378, %v398
    %v403 = vpack.c.bf16 %v400, %v399
    %v404 = vpack.c.bf16 %v402, %v401
    %v405 = vld [vmem:[%s6] sm:$0xf]
    %v406 = vld [vmem:[%s6 + $0x4] sm:$0xf]
    %v407 = vld [vmem:[%s6 + $0x8] sm:$0xf]
    %v408 = vld [vmem:[%s6 + $0xc] sm:$0xf]
    %v409 = vld [vmem:[%s7] sm:$0x1]
    %v411 = vperm.slane %v409, 0
    %415 = vrot.lane.b32.xlu0 %v403, 96
    %v416 = vpop.permute.xlu0 %415
    %417 = vrot.lane.b32.xlu0 %v404, 96
    %v418 = vpop.permute.xlu0 %417
    %v423 = vunpack.c.l.b16 %v405
    %v424 = vunpack.c.l.b16 %v406
    %v425 = vunpack.c.l.b16 %v407
    %v426 = vunpack.c.l.b16 %v408
    %v427 = vpack.c.b16 %v424, %v423
    %v428 = vpack.c.b16 %v426, %v425
    %v432 = vsel %vm168, %v416, 0
    %v435 = vsel %vm168, %v418, 0
    %437 = vmatpush.bf16.msra.mxu0 0
    %438 = vmatpush.bf16.msra.mxu0 0
    %439 = vmatpush.bf16.msra.mxu0 0
    %440 = vmatpush.bf16.msra.mxu0 0
    %441 = vmatpush.bf16.msra.mxu0 0
    %442 = vmatpush.bf16.msra.mxu0 0
    %443 = vmatpush.bf16.msra.mxu0 %v428
    %444 = vmatpush.bf16.msra.mxu0 %v427
    %445 = vmatmul.bf16.gmra.mxu0 %v432
    %v446 = vpop.f32.mrf.mxu0
    %v447 = vadd.f32 %v411, %v446
    %v448 = vpop.f32.mrf.mxu0
    %v449 = vadd.f32 %v411, %v448
    %450 = vmatmul.bf16.gmra.mxu0 %v435
    %v451 = vpop.f32.mrf.mxu0
    %v452 = vadd.f32 %v411, %v451
    %v453 = vpop.f32.mrf.mxu0
    %v454 = vadd.f32 %v411, %v453
    %455 = vdwg.mxu0
    %v456 = vpack.c.bf16 %v447, %v447
    %v457 = vpack.c.bf16 %v449, %v449
    %v458 = vpack.c.bf16 %v452, %v452
    %v459 = vpack.c.bf16 %v454, %v454
    %460 = vst [vmem:[#allocation8] sm:$0xf] %v456
    %461 = vst [vmem:[#allocation8 + $0x4] sm:$0xf] %v457
    %462 = vst [vmem:[#allocation8 + $0x8] sm:$0xf] %v458
    %463 = vst [vmem:[#allocation8 + $0xc] sm:$0xf] %v459
    // Predicated region
    $region46: #{tpu_custom_call.1} parent=1 // pred_check
      _
    $region47: #{tpu_custom_call.1} parent=1 // pred_check_branch
      %465 = sbr.rel (0) target = $region49
    $region48: #{tpu_custom_call.1} parent=1 // pred_region
      %467 = vsyncadd [#allocation4], 64
      %s468 = sshll.u32 [#allocation8], 4
      %s469 = int_to_ptr.vmem [resolvable:$true] %s468
      %s470 = sshll.u32 %s8, 4
      %s471 = int_to_ptr.hbm [resolvable:$true] %s470
      %476 = dma.vmem_to_hbm [thread:$0]  %s469, 192, %s471, [#allocation4], 64, 64, 4
    $region49: #{tpu_custom_call.1} parent=1 // pred_fallthru
      _
    // Predicated region
    $region50: #{tpu_custom_call.1} parent=1 // pred_check
      _
    $region51: #{tpu_custom_call.1} parent=1 // pred_check_branch
      %478 = sbr.rel (0) target = $region53
    $region52: #{tpu_custom_call.1} parent=1 // pred_region
      %480 = dma.done [#allocation4], 256
    $region53: #{tpu_custom_call.1} parent=1 // pred_fallthru
      _
    %481 = vsyncpa [#allocation3], 1
    %482 = vsyncpa [#allocation6], 1
    %483 = vsyncpa [#allocation4], 1

</llo_original>
